<compile_context>
chip_gen: v7x
topology: tpu7x:2x2x1
jax: 0.10.0
libtpu: 0.0.40
codegen_flags: <defaults>
</compile_context>

<pallas_src>
import functools

import jax
import jax.numpy as jnp
import numpy as np
from jax.experimental import pallas as pl
from jax.experimental.pallas import tpu as pltpu

LANE = 128   # lane width (last-dim alignment for MXU-facing operands)
SUB = 8      # f32 sublane alignment (second-to-last dim)


def _pad_to(n: int, m: int) -> int:
    return ((n + m - 1) // m) * m


def _cdiv(a: int, b: int) -> int:
    return -(-a // b)


# ----------------------------------------------------------------------------
# Kernel
# ----------------------------------------------------------------------------
def _neural_env_kernel(
    xu_ref,                            # [tb, F]   f32  (batch-tiled, native width)
    mean_ref, istd_ref,                # [1, F]    f32  input mean / inv-std
    w1_ref, b1_ref,                    # [Kp, Hp] bf16, [1, Hp] f32
    w2_ref, b2_ref,                    # [Hp, Hp] bf16, [1, Hp] f32
    w3_ref, b3_ref,                    # [Hp, Hp] bf16, [1, Hp] f32
    w4_ref, b4_ref,                    # [Hp, Dp] bf16, [1, Dp] f32
    o_ref,                             # [tb, D]   f32  (native width)
    xpad_ref,                          # scratch [tb, Kp] f32
    *, dt: float, n_dims: int, n_feat: int,
):
    f32 = jnp.float32
    bf16 = jnp.bfloat16

    xu = xu_ref[...]                                       # [tb, F] f32

    # input normalization: (v - mean) * inv_std  (zero-std dims handled in prep)
    xn = (xu - mean_ref[...]) * istd_ref[...]              # [tb, F] f32

    # lane-pad the normalized input to the MXU contraction width in VMEM only
    # (padded lanes stay 0, matching the zero rows of W1).
    xpad_ref[...] = jnp.zeros_like(xpad_ref)
    xpad_ref[:, :n_feat] = xn
    x1 = xpad_ref[...].astype(bf16)                        # [tb, Kp] bf16

    # layer 1 (fused [x|u] matmul)
    h = jnp.dot(x1, w1_ref[...], preferred_element_type=f32) + b1_ref[...]
    h = jnp.tanh(h)

    # layers 2, 3
    h = jnp.tanh(jnp.dot(h.astype(bf16), w2_ref[...],
                         preferred_element_type=f32) + b2_ref[...])
    h = jnp.tanh(jnp.dot(h.astype(bf16), w3_ref[...],
                         preferred_element_type=f32) + b3_ref[...])

    # output layer -> x_dot (lane-dense [tb, Dp] MXU result, sliced before store)
    xdot = jnp.dot(h.astype(bf16), w4_ref[...],
                   preferred_element_type=f32) + b4_ref[...]

    # Euler step on the raw (un-normalized) state, stored at native width.
    x_raw = xu[:, :n_dims]
    o_ref[...] = (x_raw + xdot[:, :n_dims] * dt).astype(o_ref.dtype)


# ----------------------------------------------------------------------------
# One-time parameter preprocessing (pad + bf16-cast weights, build norm rows)
# ----------------------------------------------------------------------------
def prepare_neural_env_params(params):
    """Pad/cast weights & stats once; reuse the result for every env step.

    params (math layout, [in, out] weights):
      goal_point [D], u_eq [C], state_std [D], ctrl_std [C],
      w1x [D, H], w1u [C, H], b1 [H], w2 [H, H], b2 [H],
      w3 [H, H], b3 [H], w4 [H, D], b4 [D]
    """
    f32, bf16 = jnp.float32, jnp.bfloat16

    gp = jnp.asarray(params["goal_point"], f32).reshape(-1)     # [D]
    ue = jnp.asarray(params["u_eq"], f32).reshape(-1)           # [C]
    s_std = jnp.asarray(params["state_std"], f32).reshape(-1)
    c_std = jnp.asarray(params["ctrl_std"], f32).reshape(-1)

    D, C = gp.shape[0], ue.shape[0]
    F = D + C
    H = params["w2"].shape[0]
    Hp = _pad_to(H, LANE)
    Kp = _pad_to(F, LANE)   # layer-1 contraction width (padded in-kernel)
    Dp = _pad_to(D, LANE)   # layer-4 output width (lane-dense MXU result)

    # zero-std dims -> divide by 1 (same as the torch zero_mask trick)
    s_inv = 1.0 / jnp.where(s_std == 0, 1.0, s_std)
    c_inv = 1.0 / jnp.where(c_std == 0, 1.0, c_std)

    def pad2(a, rows, cols, dtype):
        a = jnp.asarray(a, f32)
        a = jnp.pad(a, ((0, rows - a.shape[0]), (0, cols - a.shape[1])))
        return a.astype(dtype)

    def pad_row(v, cols):
        v = jnp.asarray(v, f32).reshape(-1)
        return jnp.pad(v, (0, cols - v.shape[0])).reshape(1, cols)

    w1 = jnp.concatenate([jnp.asarray(params["w1x"], f32),
                          jnp.asarray(params["w1u"], f32)], axis=0)   # [F, H]

    return {
        "mean": jnp.concatenate([gp, ue]).reshape(1, F),
        "inv_std": jnp.concatenate([s_inv, c_inv]).reshape(1, F),
        "w1": pad2(w1, Kp, Hp, bf16),
        "b1": pad_row(params["b1"], Hp),
        "w2": pad2(params["w2"], Hp, Hp, bf16),
        "b2": pad_row(params["b2"], Hp),
        "w3": pad2(params["w3"], Hp, Hp, bf16),
        "b3": pad_row(params["b3"], Hp),
        "w4": pad2(params["w4"], Hp, Dp, bf16),
        "b4": pad_row(params["b4"], Dp),
    }


# ----------------------------------------------------------------------------
# One env step (fused Pallas call)
# ----------------------------------------------------------------------------
@functools.partial(jax.jit, static_argnames=("dt", "block_b"))
def neural_env_step(x, u, prepped, *, dt: float = 0.01, block_b: int = 2048):
    """x_{t+1} = x + MLP(normalize([x, u])) * dt   (prepped = prepare_neural_env_params(...))."""
    f32 = jnp.float32
    x = x.astype(f32)
    u = u.astype(f32)

    B, D = x.shape
    C = u.shape[1]
    F = D + C
    Kp, Hp = prepped["w1"].shape
    Dp = prepped["w4"].shape[1]
    assert prepped["mean"].shape[1] == F, "params/state dims mismatch"

    # batch tiling: aim for an even number (>= 2) of tiles so v7x's 2 TCs split it
    b8 = _pad_to(B, SUB)
    if b8 <= SUB:
        ntiles = 1
    else:
        ntiles = max(2, _cdiv(b8, block_b))
        ntiles += ntiles % 2
    tb = _pad_to(_cdiv(b8, ntiles), SUB)
    bp = tb * ntiles

    # single cheap host-side pass: concat x|u at native width, pad batch rows only
    xu = jnp.concatenate([x, u], axis=1)                   # [B, F]
    if bp != B:
        xu = jnp.pad(xu, ((0, bp - B), (0, 0)))

    kernel = functools.partial(_neural_env_kernel, dt=float(dt), n_dims=D, n_feat=F)

    # resident (same block every grid step) specs for weights / stats
    def resident(r, c):
        return pl.BlockSpec((r, c), lambda i: (0, 0))

    out = pl.pallas_call(
        kernel,
        out_shape=jax.ShapeDtypeStruct((bp, D), f32),
        grid_spec=pltpu.PrefetchScalarGridSpec(
            num_scalar_prefetch=0,
            grid=(ntiles,),
            in_specs=[
                pl.BlockSpec((tb, F), lambda i: (i, 0)),   # [x|u] (batch-tiled, native width)
                resident(1, F),      # input mean
                resident(1, F),      # input inv-std
                resident(Kp, Hp),    # W1 (bf16)
                resident(1, Hp),     # b1
                resident(Hp, Hp),    # W2 (bf16)
                resident(1, Hp),     # b2
                resident(Hp, Hp),    # W3 (bf16)
                resident(1, Hp),     # b3
                resident(Hp, Dp),    # W4 (bf16)
                resident(1, Dp),     # b4
            ],
            out_specs=pl.BlockSpec((tb, D), lambda i: (i, 0)),
            scratch_shapes=[pltpu.VMEM((tb, Kp), jnp.float32)],   # lane-pad buffer
        ),
        compiler_params=pltpu.CompilerParams(
            dimension_semantics=("parallel",),
            vmem_limit_bytes=32 * 1024 * 1024,
        ),
    )(xu, prepped["mean"], prepped["inv_std"],
      prepped["w1"], prepped["b1"], prepped["w2"], prepped["b2"],
      prepped["w3"], prepped["b3"], prepped["w4"], prepped["b4"])

    return out[:B]


# ----------------------------------------------------------------------------
# Pure-JAX reference (mirrors the PyTorch forward)
# ----------------------------------------------------------------------------
def _reference_forward(x, u, p, dt):
    ss = jnp.where(p["state_std"] == 0, 1.0, p["state_std"])
    cs = jnp.where(p["ctrl_std"] == 0, 1.0, p["ctrl_std"])
    xn = (x - p["goal_point"]) / ss
    un = (u - p["u_eq"]) / cs
    h = jnp.tanh(xn @ p["w1x"] + un @ p["w1u"] + p["b1"])
    h = jnp.tanh(h @ p["w2"] + p["b2"])
    h = jnp.tanh(h @ p["w3"] + p["b3"])
    xdot = h @ p["w4"] + p["b4"]
    return x + xdot * dt


# ----------------------------------------------------------------------------
# Demo / self-test
# ----------------------------------------------------------------------------
if __name__ == "__main__":
    key = jax.random.PRNGKey(0)
    batch, n_dims, n_controls, hidden = 12, 4, 2, 128   # batch=12 exercises row padding
    dt = 0.01

    ks = jax.random.split(key, 16)
    sc = 0.1
    params = {
        "goal_point": jax.random.normal(ks[0], (n_dims,), jnp.float32),
        "u_eq": jax.random.normal(ks[1], (n_controls,), jnp.float32),
        # include a zero std to exercise the zero-mask path
        "state_std": jnp.array([1.0, 0.5, 0.0, 2.0], jnp.float32),
        "ctrl_std": jnp.array([0.7, 1.3], jnp.float32),
        "w1x": sc * jax.random.normal(ks[2], (n_dims, hidden), jnp.float32),
        "w1u": sc * jax.random.normal(ks[3], (n_controls, hidden), jnp.float32),
        "b1": sc * jax.random.normal(ks[4], (hidden,), jnp.float32),
        "w2": sc * jax.random.normal(ks[5], (hidden, hidden), jnp.float32),
        "b2": sc * jax.random.normal(ks[6], (hidden,), jnp.float32),
        "w3": sc * jax.random.normal(ks[7], (hidden, hidden), jnp.float32),
        "b3": sc * jax.random.normal(ks[8], (hidden,), jnp.float32),
        "w4": sc * jax.random.normal(ks[9], (hidden, n_dims), jnp.float32),
        "b4": sc * jax.random.normal(ks[10], (n_dims,), jnp.float32),
    }

    x0 = jax.random.normal(ks[11], (batch, n_dims), jnp.float32)
    u0 = jax.random.normal(ks[12], (batch, n_controls), jnp.float32)

    prepped = prepare_neural_env_params(params)          # one-time weight prep

    x_next = neural_env_step(x0, u0, prepped, dt=dt)
    x_next = jax.block_until_ready(x_next)

    x_ref = jax.block_until_ready(_reference_forward(x0, u0, params, dt))

    assert x_next.shape == (batch, n_dims), x_next.shape
    # bf16 matmul operands (f32 accumulation) -> slightly looser tolerance
    np.testing.assert_allclose(np.asarray(x_next), np.asarray(x_ref),
                               rtol=1e-2, atol=1e-2)
    print("KERNEL_OK")
</pallas_src>

<mosaic_0001>
module attributes {stable_mosaic.version = 11 : i64} {
  func.func @_neural_env_kernel(%arg0: i32, %arg1: memref<8x6xf32, #tpu.memory_space<vmem>>, %arg2: memref<1x6xf32, #tpu.memory_space<vmem>>, %arg3: memref<1x6xf32, #tpu.memory_space<vmem>>, %arg4: memref<128x128xbf16, #tpu.memory_space<vmem>>, %arg5: memref<1x128xf32, #tpu.memory_space<vmem>>, %arg6: memref<128x128xbf16, #tpu.memory_space<vmem>>, %arg7: memref<1x128xf32, #tpu.memory_space<vmem>>, %arg8: memref<128x128xbf16, #tpu.memory_space<vmem>>, %arg9: memref<1x128xf32, #tpu.memory_space<vmem>>, %arg10: memref<128x128xbf16, #tpu.memory_space<vmem>>, %arg11: memref<1x128xf32, #tpu.memory_space<vmem>>, %arg12: memref<8x4xf32, #tpu.memory_space<vmem>>, %arg13: memref<8x128xf32, #tpu.memory_space<vmem>>) attributes {dimension_semantics = [#tpu.dimension_semantics<parallel>], iteration_bounds = array<i64: 2>, scalar_prefetch = 0 : i64, scratch_operands = 1 : i64, tpu.core_type = #tpu.core_type<tc>, window_params = [{transform_indices = @transform_0, window_bounds = array<i64: 8, 6>}, {pipeline_mode = #tpu.pipeline_mode<synchronous>, transform_indices = @transform_1, window_bounds = array<i64: 1, 6>}, {pipeline_mode = #tpu.pipeline_mode<synchronous>, transform_indices = @transform_2, window_bounds = array<i64: 1, 6>}, {pipeline_mode = #tpu.pipeline_mode<synchronous>, transform_indices = @transform_3, window_bounds = array<i64: 128, 128>}, {pipeline_mode = #tpu.pipeline_mode<synchronous>, transform_indices = @transform_4, window_bounds = array<i64: 1, 128>}, {pipeline_mode = #tpu.pipeline_mode<synchronous>, transform_indices = @transform_5, window_bounds = array<i64: 128, 128>}, {pipeline_mode = #tpu.pipeline_mode<synchronous>, transform_indices = @transform_6, window_bounds = array<i64: 1, 128>}, {pipeline_mode = #tpu.pipeline_mode<synchronous>, transform_indices = @transform_7, window_bounds = array<i64: 128, 128>}, {pipeline_mode = #tpu.pipeline_mode<synchronous>, transform_indices = @transform_8, window_bounds = array<i64: 1, 128>}, {pipeline_mode = #tpu.pipeline_mode<synchronous>, transform_indices = @transform_9, window_bounds = array<i64: 128, 128>}, {pipeline_mode = #tpu.pipeline_mode<synchronous>, transform_indices = @transform_10, window_bounds = array<i64: 1, 128>}, {transform_indices = @transform_11, window_bounds = array<i64: 8, 4>}]} {
    %c0 = arith.constant 0 : index
    %c0_0 = arith.constant 0 : index
    %0 = vector.load %arg1[%c0, %c0_0] : memref<8x6xf32, #tpu.memory_space<vmem>>, vector<8x6xf32>
    %c0_1 = arith.constant 0 : index
    %c0_2 = arith.constant 0 : index
    %1 = vector.load %arg2[%c0_1, %c0_2] : memref<1x6xf32, #tpu.memory_space<vmem>>, vector<1x6xf32>
    %2 = vector.broadcast %1 : vector<1x6xf32> to vector<8x6xf32>
    %3 = arith.subf %0, %2 : vector<8x6xf32>
    %c0_3 = arith.constant 0 : index
    %c0_4 = arith.constant 0 : index
    %4 = vector.load %arg3[%c0_3, %c0_4] : memref<1x6xf32, #tpu.memory_space<vmem>>, vector<1x6xf32>
    %5 = vector.broadcast %4 : vector<1x6xf32> to vector<8x6xf32>
    %6 = arith.mulf %3, %5 : vector<8x6xf32>
    %cst = arith.constant 0.000000e+00 : f32
    %7 = vector.broadcast %cst : f32 to vector<8x128xf32>
    %c0_5 = arith.constant 0 : index
    %c0_6 = arith.constant 0 : index
    %8 = vector.load %arg13[%c0_5, %c0_6] : memref<8x128xf32, #tpu.memory_space<vmem>>, vector<8x128xf32>
    tpu.vector_store %arg13[%c0_5, %c0_6], %7 {strides = array<i32>} : memref<8x128xf32, #tpu.memory_space<vmem>>, vector<8x128xf32>,
    %c0_7 = arith.constant 0 : index
    %c0_8 = arith.constant 0 : index
    %9 = vector.load %arg13[%c0_7, %c0_8] : memref<8x128xf32, #tpu.memory_space<vmem>>, vector<8x6xf32>
    tpu.vector_store %arg13[%c0_7, %c0_8], %6 {strides = array<i32>} : memref<8x128xf32, #tpu.memory_space<vmem>>, vector<8x6xf32>,
    %c0_9 = arith.constant 0 : index
    %c0_10 = arith.constant 0 : index
    %10 = vector.load %arg13[%c0_9, %c0_10] : memref<8x128xf32, #tpu.memory_space<vmem>>, vector<8x128xf32>
    %11 = arith.truncf %10 : vector<8x128xf32> to vector<8x128xbf16>
    %c0_11 = arith.constant 0 : index
    %c0_12 = arith.constant 0 : index
    %12 = vector.load %arg4[%c0_11, %c0_12] : memref<128x128xbf16, #tpu.memory_space<vmem>>, vector<128x128xbf16>
    %cst_13 = arith.constant dense<0.000000e+00> : vector<8x128xf32>
    %13 = tpu.matmul %11, %12, %cst_13 {dimension_numbers = #tpu.dot_dimension_numbers<[1], [0], [0], [1], [0, 0, 1, 1], [], []>} : vector<8x128xbf16>, vector<128x128xbf16>, vector<8x128xf32> -> vector<8x128xf32>
    %c0_14 = arith.constant 0 : index
    %c0_15 = arith.constant 0 : index
    %14 = vector.load %arg5[%c0_14, %c0_15] : memref<1x128xf32, #tpu.memory_space<vmem>>, vector<1x128xf32>
    %15 = vector.broadcast %14 : vector<1x128xf32> to vector<8x128xf32>
    %16 = arith.addf %13, %15 : vector<8x128xf32>
    %17 = math.tanh %16 : vector<8x128xf32>
    %18 = arith.truncf %17 : vector<8x128xf32> to vector<8x128xbf16>
    %c0_16 = arith.constant 0 : index
    %c0_17 = arith.constant 0 : index
    %19 = vector.load %arg6[%c0_16, %c0_17] : memref<128x128xbf16, #tpu.memory_space<vmem>>, vector<128x128xbf16>
    %cst_18 = arith.constant dense<0.000000e+00> : vector<8x128xf32>
    %20 = tpu.matmul %18, %19, %cst_18 {dimension_numbers = #tpu.dot_dimension_numbers<[1], [0], [0], [1], [0, 0, 1, 1], [], []>} : vector<8x128xbf16>, vector<128x128xbf16>, vector<8x128xf32> -> vector<8x128xf32>
    %c0_19 = arith.constant 0 : index
    %c0_20 = arith.constant 0 : index
    %21 = vector.load %arg7[%c0_19, %c0_20] : memref<1x128xf32, #tpu.memory_space<vmem>>, vector<1x128xf32>
    %22 = vector.broadcast %21 : vector<1x128xf32> to vector<8x128xf32>
    %23 = arith.addf %20, %22 : vector<8x128xf32>
    %24 = math.tanh %23 : vector<8x128xf32>
    %25 = arith.truncf %24 : vector<8x128xf32> to vector<8x128xbf16>
    %c0_21 = arith.constant 0 : index
    %c0_22 = arith.constant 0 : index
    %26 = vector.load %arg8[%c0_21, %c0_22] : memref<128x128xbf16, #tpu.memory_space<vmem>>, vector<128x128xbf16>
    %cst_23 = arith.constant dense<0.000000e+00> : vector<8x128xf32>
    %27 = tpu.matmul %25, %26, %cst_23 {dimension_numbers = #tpu.dot_dimension_numbers<[1], [0], [0], [1], [0, 0, 1, 1], [], []>} : vector<8x128xbf16>, vector<128x128xbf16>, vector<8x128xf32> -> vector<8x128xf32>
    %c0_24 = arith.constant 0 : index
    %c0_25 = arith.constant 0 : index
    %28 = vector.load %arg9[%c0_24, %c0_25] : memref<1x128xf32, #tpu.memory_space<vmem>>, vector<1x128xf32>
    %29 = vector.broadcast %28 : vector<1x128xf32> to vector<8x128xf32>
    %30 = arith.addf %27, %29 : vector<8x128xf32>
    %31 = math.tanh %30 : vector<8x128xf32>
    %32 = arith.truncf %31 : vector<8x128xf32> to vector<8x128xbf16>
    %c0_26 = arith.constant 0 : index
    %c0_27 = arith.constant 0 : index
    %33 = vector.load %arg10[%c0_26, %c0_27] : memref<128x128xbf16, #tpu.memory_space<vmem>>, vector<128x128xbf16>
    %cst_28 = arith.constant dense<0.000000e+00> : vector<8x128xf32>
    %34 = tpu.matmul %32, %33, %cst_28 {dimension_numbers = #tpu.dot_dimension_numbers<[1], [0], [0], [1], [0, 0, 1, 1], [], []>} : vector<8x128xbf16>, vector<128x128xbf16>, vector<8x128xf32> -> vector<8x128xf32>
    %c0_29 = arith.constant 0 : index
    %c0_30 = arith.constant 0 : index
    %35 = vector.load %arg11[%c0_29, %c0_30] : memref<1x128xf32, #tpu.memory_space<vmem>>, vector<1x128xf32>
    %36 = vector.broadcast %35 : vector<1x128xf32> to vector<8x128xf32>
    %37 = arith.addf %34, %36 : vector<8x128xf32>
    %38 = vector.extract_strided_slice %0 {offsets = [0, 0], sizes = [8, 4], strides = [1, 1]} : vector<8x6xf32> to vector<8x4xf32>
    %39 = vector.extract_strided_slice %37 {offsets = [0, 0], sizes = [8, 4], strides = [1, 1]} : vector<8x128xf32> to vector<8x4xf32>
    %cst_31 = arith.constant 0.00999999977 : f32
    %40 = vector.broadcast %cst_31 : f32 to vector<8x4xf32>
    %41 = arith.mulf %39, %40 : vector<8x4xf32>
    %42 = arith.addf %38, %41 : vector<8x4xf32>
    %c0_32 = arith.constant 0 : index
    %c0_33 = arith.constant 0 : index
    %43 = vector.load %arg12[%c0_32, %c0_33] : memref<8x4xf32, #tpu.memory_space<vmem>>, vector<8x4xf32>
    tpu.vector_store %arg12[%c0_32, %c0_33], %42 {strides = array<i32>} : memref<8x4xf32, #tpu.memory_space<vmem>>, vector<8x4xf32>,
    return
  }
  func.func @transform_0(%arg0: i32) -> (i32, i32) {
    %c0_i32 = arith.constant 0 : i32
    %c0_i32_0 = arith.constant 0 : i32
    return %arg0, %c0_i32 : i32, i32
  }
  func.func @transform_1(%arg0: i32) -> (i32, i32) {
    %c0_i32 = arith.constant 0 : i32
    %c0_i32_0 = arith.constant 0 : i32
    %c0_i32_1 = arith.constant 0 : i32
    return %c0_i32, %c0_i32_0 : i32, i32
  }
  func.func @transform_2(%arg0: i32) -> (i32, i32) {
    %c0_i32 = arith.constant 0 : i32
    %c0_i32_0 = arith.constant 0 : i32
    %c0_i32_1 = arith.constant 0 : i32
    return %c0_i32, %c0_i32_0 : i32, i32
  }
  func.func @transform_3(%arg0: i32) -> (i32, i32) {
    %c0_i32 = arith.constant 0 : i32
    %c0_i32_0 = arith.constant 0 : i32
    %c0_i32_1 = arith.constant 0 : i32
    return %c0_i32, %c0_i32_0 : i32, i32
  }
  func.func @transform_4(%arg0: i32) -> (i32, i32) {
    %c0_i32 = arith.constant 0 : i32
    %c0_i32_0 = arith.constant 0 : i32
    %c0_i32_1 = arith.constant 0 : i32
    return %c0_i32, %c0_i32_0 : i32, i32
  }
  func.func @transform_5(%arg0: i32) -> (i32, i32) {
    %c0_i32 = arith.constant 0 : i32
    %c0_i32_0 = arith.constant 0 : i32
    %c0_i32_1 = arith.constant 0 : i32
    return %c0_i32, %c0_i32_0 : i32, i32
  }
  func.func @transform_6(%arg0: i32) -> (i32, i32) {
    %c0_i32 = arith.constant 0 : i32
    %c0_i32_0 = arith.constant 0 : i32
    %c0_i32_1 = arith.constant 0 : i32
    return %c0_i32, %c0_i32_0 : i32, i32
  }
  func.func @transform_7(%arg0: i32) -> (i32, i32) {
    %c0_i32 = arith.constant 0 : i32
    %c0_i32_0 = arith.constant 0 : i32
    %c0_i32_1 = arith.constant 0 : i32
    return %c0_i32, %c0_i32_0 : i32, i32
  }
  func.func @transform_8(%arg0: i32) -> (i32, i32) {
    %c0_i32 = arith.constant 0 : i32
    %c0_i32_0 = arith.constant 0 : i32
    %c0_i32_1 = arith.constant 0 : i32
    return %c0_i32, %c0_i32_0 : i32, i32
  }
  func.func @transform_9(%arg0: i32) -> (i32, i32) {
    %c0_i32 = arith.constant 0 : i32
    %c0_i32_0 = arith.constant 0 : i32
    %c0_i32_1 = arith.constant 0 : i32
    return %c0_i32, %c0_i32_0 : i32, i32
  }
  func.func @transform_10(%arg0: i32) -> (i32, i32) {
    %c0_i32 = arith.constant 0 : i32
    %c0_i32_0 = arith.constant 0 : i32
    %c0_i32_1 = arith.constant 0 : i32
    return %c0_i32, %c0_i32_0 : i32, i32
  }
  func.func @transform_11(%arg0: i32) -> (i32, i32) {
    %c0_i32 = arith.constant 0 : i32
    %c0_i32_0 = arith.constant 0 : i32
    return %arg0, %c0_i32 : i32, i32
  }
}

</mosaic_0001>

<llo_original>
// kernel: neural_env_step.1
$region0: #{neural_env_step.1}
  #allocation0 [shape = 'u32[]', space=smem, size = 0x4, offset = 0x4, fixed_abs, tag = 'smem constant byte address 0x4 - core index']
  #allocation1 [shape = 'u32[144,128]{1,0:T(1,128)}', space=vmem, size = 0x12000, scoped, tag = 'internal scratch']
  #allocation2 [shape = 'f32[8,128]{1,0:T(8,128)}', space=vmem, size = 0x1000, scoped, tag = 'scratch operand']
  %s0 = inlined_call_operand.vmem [shape: f32[16,6], index: 0, kind: input, shape index: {}]
  %s1 = inlined_call_operand.vmem [shape: f32[1,6], index: 1, kind: input, shape index: {}]
  %s2 = inlined_call_operand.vmem [shape: f32[1,6], index: 2, kind: input, shape index: {}]
  %s3 = inlined_call_operand.vmem [shape: bf16[128,128], index: 3, kind: input, shape index: {}]
  %s4 = inlined_call_operand.vmem [shape: f32[1,128], index: 4, kind: input, shape index: {}]
  %s5 = inlined_call_operand.hbm [shape: bf16[128,128], index: 5, kind: input, shape index: {}]
  %s6 = inlined_call_operand.vmem [shape: f32[1,128], index: 6, kind: input, shape index: {}]
  %s7 = inlined_call_operand.hbm [shape: bf16[128,128], index: 7, kind: input, shape index: {}]
  %s8 = inlined_call_operand.vmem [shape: f32[1,128], index: 8, kind: input, shape index: {}]
  %s9 = inlined_call_operand.hbm [shape: bf16[128,128], index: 9, kind: input, shape index: {}]
  %s10 = inlined_call_operand.vmem [shape: f32[1,128], index: 10, kind: input, shape index: {}]
  %s11 = inlined_call_operand.vmem [shape: f32[16,4], index: 11, kind: output, shape index: {}]
  %s12 = sld [smem:[#allocation0]]
  $region89: #{neural_env_step.1} parent=0
    _
  %s14 = ssub.s32 1, %s12
  %s15 = scalar_select 0, %s14, %s12
  $region1: #{neural_env_step.1} parent=0
    #allocation3 [shape = 'u8[32768]{0}', space=vmem, size = 0x8000, scoped, tag = 'input window, operand 5, single buffered']
    #allocation4 [shape = 's32[2]{0}', space=sflag, size = 0x8, scoped, tag = 'scoped memory for neural_env_step.1']
    #allocation5 [shape = 'u8[32768]{0}', space=vmem, size = 0x8000, scoped, tag = 'input window, operand 7, single buffered']
    #allocation6 [shape = 's32[1]{0}', space=sflag, size = 0x4, scoped, tag = 'scoped memory for neural_env_step.1']
    #allocation7 [shape = 'u8[32768]{0}', space=vmem, size = 0x8000, scoped, tag = 'input window, operand 9, single buffered']
    %16 = vsyncpa [#allocation4], 0
    %17 = vsyncpa [#allocation6], 0
    loop: start=0, step=1, limit=4
    $region2: #{neural_env_step.1} parent=1 // loop_pre_header
      _
    $region3: #{neural_env_step.1} parent=1 // loop_header
      %s19 = sphi 0, %s23
      %p20 = scmp.ge.s32.totalorder %s19, 4
      %s29 = sphi 0, %s31
      %s32 = sphi 0, %s29
      %s33 = sphi 0, %s32
      %s49 = sphi 0, %s33
      %s53 = sphi 0, %s53
      %s55 = sphi 0, %s53
      %s56 = sphi 0, %s55
      %s70 = sphi 0, %s56
      %s74 = sphi 0, %s74
      %s76 = sphi 0, %s74
      %s77 = sphi 0, %s76
      %s91 = sphi 0, %s77
      %s95 = sphi 0, %s95
      %s97 = sphi 0, %s95
      %s98 = sphi 0, %s97
      %s112 = sphi 0, %s98
      %s116 = sphi 0, %s116
      %s118 = sphi 0, %s116
      %s119 = sphi 0, %s118
      %s133 = sphi 0, %s119
      %s137 = sphi 0, %s137
      %s139 = sphi 0, %s137
      %s140 = sphi 0, %s139
      %s154 = sphi 0, %s140
      %s158 = sphi 0, %s158
      %s160 = sphi 0, %s158
      %s161 = sphi 0, %s160
      %s175 = sphi 0, %s161
      %s179 = sphi 0, %s179
      %s181 = sphi 0, %s179
      %s182 = sphi 0, %s181
      %s196 = sphi 0, %s182
      %s200 = sphi 0, %s200
      %s202 = sphi 0, %s200
      %s203 = sphi 0, %s202
      %s217 = sphi 0, %s203
      %s221 = sphi 0, %s221
      %s223 = sphi 0, %s221
      %s224 = sphi 0, %s223
      %s238 = sphi 0, %s224
      %s242 = sphi 0, %s242
      %s244 = sphi 0, %s242
      %s245 = sphi 0, %s244
      %s259 = sphi 0, %s245
      %s265 = sphi 0, %s267
      %s268 = sphi 0, %s265
      %s269 = sphi 0, %s268
      %s285 = sphi 0, %s269
    $region4: #{neural_env_step.1} parent=1 // loop_header_branch
      %22 = sbr.rel (%p20) target = $region8
    $region5: #{neural_env_step.1} parent=1 // loop_body
      %s24 = ssub.s32 %s19, 1
      %s25 = ssub.s32 %s19, 2
      %s26 = sadd.s32 %s19, 1
      %s27 = ssub.s32 %s19, %s26
      %p28 = scmp.eq.s32.totalorder %s27, 0
      %s30 = sadd.s32 %s29, 1
      %s31 = scalar_select %p28, %s29, %s30
      %p34 = pneg %p28
      %p35 = scmp.eq.s32.totalorder %s19, 1
      %p36 = por %p34, %p35
      %p37 = scmp.ne.s32.totalorder %s29, %s32
      %p38 = scmp.eq.s32.totalorder %s19, 0
      %p39 = por %p37, %p38
      %p40 = scmp.ne.s32.totalorder %s29, %s32
      %p41 = scmp.eq.s32.totalorder %s24, 1
      %p42 = por %p40, %p41
      %p43 = scmp.ne.s32.totalorder %s32, %s33
      %p44 = scmp.eq.s32.totalorder %s24, 0
      %p45 = por %p43, %p44
      %p46 = scmp.ne.s32.totalorder %s32, %s33
      %p47 = scmp.eq.s32.totalorder %s25, 1
      %p48 = por %p46, %p47
      %p50 = scmp.ne.s32.totalorder %s33, %s49
      %p51 = scmp.eq.s32.totalorder %s25, 0
      %p52 = por %p50, %p51
      %s54 = sadd.s32 %s53, 1
      %p57 = scmp.eq.s32.totalorder %s19, 1
      %p58 = scmp.ne.s32.totalorder %s53, %s55
      %p59 = scmp.eq.s32.totalorder %s19, 0
      %p60 = por %p58, %p59
      %p61 = scmp.ne.s32.totalorder %s53, %s55
      %p62 = scmp.eq.s32.totalorder %s24, 1
      %p63 = por %p61, %p62
      %p64 = scmp.ne.s32.totalorder %s55, %s56
      %p65 = scmp.eq.s32.totalorder %s24, 0
      %p66 = por %p64, %p65
      %p67 = scmp.ne.s32.totalorder %s55, %s56
      %p68 = scmp.eq.s32.totalorder %s25, 1
      %p69 = por %p67, %p68
      %p71 = scmp.ne.s32.totalorder %s56, %s70
      %p72 = scmp.eq.s32.totalorder %s25, 0
      %p73 = por %p71, %p72
      %s75 = sadd.s32 %s74, 1
      %p78 = scmp.eq.s32.totalorder %s19, 1
      %p79 = scmp.ne.s32.totalorder %s74, %s76
      %p80 = scmp.eq.s32.totalorder %s19, 0
      %p81 = por %p79, %p80
      %p82 = scmp.ne.s32.totalorder %s74, %s76
      %p83 = scmp.eq.s32.totalorder %s24, 1
      %p84 = por %p82, %p83
      %p85 = scmp.ne.s32.totalorder %s76, %s77
      %p86 = scmp.eq.s32.totalorder %s24, 0
      %p87 = por %p85, %p86
      %p88 = scmp.ne.s32.totalorder %s76, %s77
      %p89 = scmp.eq.s32.totalorder %s25, 1
      %p90 = por %p88, %p89
      %p92 = scmp.ne.s32.totalorder %s77, %s91
      %p93 = scmp.eq.s32.totalorder %s25, 0
      %p94 = por %p92, %p93
      %s96 = sadd.s32 %s95, 1
      %p99 = scmp.eq.s32.totalorder %s19, 1
      %p100 = scmp.ne.s32.totalorder %s95, %s97
      %p101 = scmp.eq.s32.totalorder %s19, 0
      %p102 = por %p100, %p101
      %p103 = scmp.ne.s32.totalorder %s95, %s97
      %p104 = scmp.eq.s32.totalorder %s24, 1
      %p105 = por %p103, %p104
      %p106 = scmp.ne.s32.totalorder %s97, %s98
      %p107 = scmp.eq.s32.totalorder %s24, 0
      %p108 = por %p106, %p107
      %p109 = scmp.ne.s32.totalorder %s97, %s98
      %p110 = scmp.eq.s32.totalorder %s25, 1
      %p111 = por %p109, %p110
      %p113 = scmp.ne.s32.totalorder %s98, %s112
      %p114 = scmp.eq.s32.totalorder %s25, 0
      %p115 = por %p113, %p114
      %s117 = sadd.s32 %s116, 1
      %p120 = scmp.eq.s32.totalorder %s19, 1
      %p121 = scmp.ne.s32.totalorder %s116, %s118
      %p122 = scmp.eq.s32.totalorder %s19, 0
      %p123 = por %p121, %p122
      %p124 = scmp.ne.s32.totalorder %s116, %s118
      %p125 = scmp.eq.s32.totalorder %s24, 1
      %p126 = por %p124, %p125
      %p127 = scmp.ne.s32.totalorder %s118, %s119
      %p128 = scmp.eq.s32.totalorder %s24, 0
      %p129 = por %p127, %p128
      %p130 = scmp.ne.s32.totalorder %s118, %s119
      %p131 = scmp.eq.s32.totalorder %s25, 1
      %p132 = por %p130, %p131
      %p134 = scmp.ne.s32.totalorder %s119, %s133
      %p135 = scmp.eq.s32.totalorder %s25, 0
      %p136 = por %p134, %p135
      %s138 = sadd.s32 %s137, 1
      %p141 = scmp.eq.s32.totalorder %s19, 1
      %p142 = scmp.ne.s32.totalorder %s137, %s139
      %p143 = scmp.eq.s32.totalorder %s19, 0
      %p144 = por %p142, %p143
      %p145 = scmp.ne.s32.totalorder %s137, %s139
      %p146 = scmp.eq.s32.totalorder %s24, 1
      %p147 = por %p145, %p146
      %p148 = scmp.ne.s32.totalorder %s139, %s140
      %p149 = scmp.eq.s32.totalorder %s24, 0
      %p150 = por %p148, %p149
      %p151 = scmp.ne.s32.totalorder %s139, %s140
      %p152 = scmp.eq.s32.totalorder %s25, 1
      %p153 = por %p151, %p152
      %p155 = scmp.ne.s32.totalorder %s140, %s154
      %p156 = scmp.eq.s32.totalorder %s25, 0
      %p157 = por %p155, %p156
      %s159 = sadd.s32 %s158, 1
      %p162 = scmp.eq.s32.totalorder %s19, 1
      %p163 = scmp.ne.s32.totalorder %s158, %s160
      %p164 = scmp.eq.s32.totalorder %s19, 0
      %p165 = por %p163, %p164
      %p166 = scmp.ne.s32.totalorder %s158, %s160
      %p167 = scmp.eq.s32.totalorder %s24, 1
      %p168 = por %p166, %p167
      %p169 = scmp.ne.s32.totalorder %s160, %s161
      %p170 = scmp.eq.s32.totalorder %s24, 0
      %p171 = por %p169, %p170
      %p172 = scmp.ne.s32.totalorder %s160, %s161
      %p173 = scmp.eq.s32.totalorder %s25, 1
      %p174 = por %p172, %p173
      %p176 = scmp.ne.s32.totalorder %s161, %s175
      %p177 = scmp.eq.s32.totalorder %s25, 0
      %p178 = por %p176, %p177
      %s180 = sadd.s32 %s179, 1
      %p183 = scmp.eq.s32.totalorder %s19, 1
      %p184 = scmp.ne.s32.totalorder %s179, %s181
      %p185 = scmp.eq.s32.totalorder %s19, 0
      %p186 = por %p184, %p185
      %p187 = scmp.ne.s32.totalorder %s179, %s181
      %p188 = scmp.eq.s32.totalorder %s24, 1
      %p189 = por %p187, %p188
      %p190 = scmp.ne.s32.totalorder %s181, %s182
      %p191 = scmp.eq.s32.totalorder %s24, 0
      %p192 = por %p190, %p191
      %p193 = scmp.ne.s32.totalorder %s181, %s182
      %p194 = scmp.eq.s32.totalorder %s25, 1
      %p195 = por %p193, %p194
      %p197 = scmp.ne.s32.totalorder %s182, %s196
      %p198 = scmp.eq.s32.totalorder %s25, 0
      %p199 = por %p197, %p198
      %s201 = sadd.s32 %s200, 1
      %p204 = scmp.eq.s32.totalorder %s19, 1
      %p205 = scmp.ne.s32.totalorder %s200, %s202
      %p206 = scmp.eq.s32.totalorder %s19, 0
      %p207 = por %p205, %p206
      %p208 = scmp.ne.s32.totalorder %s200, %s202
      %p209 = scmp.eq.s32.totalorder %s24, 1
      %p210 = por %p208, %p209
      %p211 = scmp.ne.s32.totalorder %s202, %s203
      %p212 = scmp.eq.s32.totalorder %s24, 0
      %p213 = por %p211, %p212
      %p214 = scmp.ne.s32.totalorder %s202, %s203
      %p215 = scmp.eq.s32.totalorder %s25, 1
      %p216 = por %p214, %p215
      %p218 = scmp.ne.s32.totalorder %s203, %s217
      %p219 = scmp.eq.s32.totalorder %s25, 0
      %p220 = por %p218, %p219
      %s222 = sadd.s32 %s221, 1
      %p225 = scmp.eq.s32.totalorder %s19, 1
      %p226 = scmp.ne.s32.totalorder %s221, %s223
      %p227 = scmp.eq.s32.totalorder %s19, 0
      %p228 = por %p226, %p227
      %p229 = scmp.ne.s32.totalorder %s221, %s223
      %p230 = scmp.eq.s32.totalorder %s24, 1
      %p231 = por %p229, %p230
      %p232 = scmp.ne.s32.totalorder %s223, %s224
      %p233 = scmp.eq.s32.totalorder %s24, 0
      %p234 = por %p232, %p233
      %p235 = scmp.ne.s32.totalorder %s223, %s224
      %p236 = scmp.eq.s32.totalorder %s25, 1
      %p237 = por %p235, %p236
      %p239 = scmp.ne.s32.totalorder %s224, %s238
      %p240 = scmp.eq.s32.totalorder %s25, 0
      %p241 = por %p239, %p240
      %s243 = sadd.s32 %s242, 1
      %p246 = scmp.eq.s32.totalorder %s19, 1
      %p247 = scmp.ne.s32.totalorder %s242, %s244
      %p248 = scmp.eq.s32.totalorder %s19, 0
      %p249 = por %p247, %p248
      %p250 = scmp.ne.s32.totalorder %s242, %s244
      %p251 = scmp.eq.s32.totalorder %s24, 1
      %p252 = por %p250, %p251
      %p253 = scmp.ne.s32.totalorder %s244, %s245
      %p254 = scmp.eq.s32.totalorder %s24, 0
      %p255 = por %p253, %p254
      %p256 = scmp.ne.s32.totalorder %s244, %s245
      %p257 = scmp.eq.s32.totalorder %s25, 1
      %p258 = por %p256, %p257
      %p260 = scmp.ne.s32.totalorder %s245, %s259
      %p261 = scmp.eq.s32.totalorder %s25, 0
      %p262 = por %p260, %p261
      %s263 = ssub.s32 %s19, %s26
      %p264 = scmp.eq.s32.totalorder %s263, 0
      %s266 = sadd.s32 %s265, 1
      %s267 = scalar_select %p264, %s265, %s266
      %p270 = pneg %p264
      %p271 = scmp.eq.s32.totalorder %s19, 1
      %p272 = por %p270, %p271
      %p273 = scmp.ne.s32.totalorder %s265, %s268
      %p274 = scmp.eq.s32.totalorder %s19, 0
      %p275 = por %p273, %p274
      %p276 = scmp.ne.s32.totalorder %s265, %s268
      %p277 = scmp.eq.s32.totalorder %s24, 1
      %p278 = por %p276, %p277
      %p279 = scmp.ne.s32.totalorder %s268, %s269
      %p280 = scmp.eq.s32.totalorder %s24, 0
      %p281 = por %p279, %p280
      %p282 = scmp.ne.s32.totalorder %s268, %s269
      %p283 = scmp.eq.s32.totalorder %s25, 1
      %p284 = por %p282, %p283
      %p286 = scmp.ne.s32.totalorder %s269, %s285
      %p287 = scmp.eq.s32.totalorder %s25, 0
      %p288 = por %p286, %p287
      %p289 = scmp.le.s32.totalorder 1, %s19
      %p290 = scmp.lt.s32.totalorder %s19, 3
      %p291 = pnand %p289, %p290
      %p292 = pneg %p291
      // Predicated region
      $region9: #{neural_env_step.1} parent=5 // pred_check
        _
      $region10: #{neural_env_step.1} parent=5 // pred_check_branch
        %294 = sbr.rel (%p291) target = $region12
      $region11: #{neural_env_step.1} parent=5 // pred_region
        %s295 = ssub.s32 %s19, 1
        // Predicated region
        $region13: #{neural_env_step.1} parent=11 // pred_check
          %p296 = pneg %p66
        $region14: #{neural_env_step.1} parent=11 // pred_check_branch
          %298 = sbr.rel (%p296) target = $region16
        $region15: #{neural_env_step.1} parent=11 // pred_region
          _
        $region16: #{neural_env_step.1} parent=11 // pred_fallthru
          _
        // Predicated region
        $region17: #{neural_env_step.1} parent=11 // pred_check
          %p299 = pneg %p87
        $region18: #{neural_env_step.1} parent=11 // pred_check_branch
          %301 = sbr.rel (%p299) target = $region20
        $region19: #{neural_env_step.1} parent=11 // pred_region
          _
        $region20: #{neural_env_step.1} parent=11 // pred_fallthru
          _
        // Predicated region
        $region21: #{neural_env_step.1} parent=11 // pred_check
          %p302 = pneg %p108
        $region22: #{neural_env_step.1} parent=11 // pred_check_branch
          %304 = sbr.rel (%p302) target = $region24
        $region23: #{neural_env_step.1} parent=11 // pred_region
          _
        $region24: #{neural_env_step.1} parent=11 // pred_fallthru
          _
        // Predicated region
        $region25: #{neural_env_step.1} parent=11 // pred_check
          %p305 = pneg %p129
        $region26: #{neural_env_step.1} parent=11 // pred_check_branch
          %307 = sbr.rel (%p305) target = $region28
        $region27: #{neural_env_step.1} parent=11 // pred_region
          _
        $region28: #{neural_env_step.1} parent=11 // pred_fallthru
          _
        // Predicated region
        $region29: #{neural_env_step.1} parent=11 // pred_check
          %p308 = pneg %p150
        $region30: #{neural_env_step.1} parent=11 // pred_check_branch
          %310 = sbr.rel (%p308) target = $region32
        $region31: #{neural_env_step.1} parent=11 // pred_region
          %s312 = ssub.s32 1024, 1024
          %313 = vsyncadd [#allocation4], %s312
          %s314 = sshll.u32 [#allocation3], 4
          %s315 = int_to_ptr.vmem [resolvable:$true] %s314
          %320 = dma.hbm_to_vmem [thread:$0]  %s5, 1024, %s315, [#allocation4], 64, 64, 4
        $region32: #{neural_env_step.1} parent=11 // pred_fallthru
          _
        // Predicated region
        $region33: #{neural_env_step.1} parent=11 // pred_check
          %p321 = pneg %p171
        $region34: #{neural_env_step.1} parent=11 // pred_check_branch
          %323 = sbr.rel (%p321) target = $region36
        $region35: #{neural_env_step.1} parent=11 // pred_region
          _
        $region36: #{neural_env_step.1} parent=11 // pred_fallthru
          _
        // Predicated region
        $region37: #{neural_env_step.1} parent=11 // pred_check
          %p324 = pneg %p192
        $region38: #{neural_env_step.1} parent=11 // pred_check_branch
          %326 = sbr.rel (%p324) target = $region40
        $region39: #{neural_env_step.1} parent=11 // pred_region
          %s328 = ssub.s32 1024, 1024
          %329 = vsyncadd [#allocation6], %s328
          %s330 = sshll.u32 [#allocation5], 4
          %s331 = int_to_ptr.vmem [resolvable:$true] %s330
          %336 = dma.hbm_to_vmem [thread:$0]  %s7, 1024, %s331, [#allocation6], 64, 64, 4
        $region40: #{neural_env_step.1} parent=11 // pred_fallthru
          _
        // Predicated region
        $region41: #{neural_env_step.1} parent=11 // pred_check
          %p337 = pneg %p213
        $region42: #{neural_env_step.1} parent=11 // pred_check_branch
          %339 = sbr.rel (%p337) target = $region44
        $region43: #{neural_env_step.1} parent=11 // pred_region
          _
        $region44: #{neural_env_step.1} parent=11 // pred_fallthru
          _
        // Predicated region
        $region45: #{neural_env_step.1} parent=11 // pred_check
          %p340 = pneg %p234
        $region46: #{neural_env_step.1} parent=11 // pred_check_branch
          %342 = sbr.rel (%p340) target = $region48
        $region47: #{neural_env_step.1} parent=11 // pred_region
          %s344 = ssub.s32 1024, 1024
          %345 = vsyncadd [#allocation6], %s344
          %s346 = sshll.u32 [#allocation7], 4
          %s347 = int_to_ptr.vmem [resolvable:$true] %s346
          %352 = dma.hbm_to_vmem [thread:$0]  %s9, 1024, %s347, [#allocation6], 64, 64, 4
        $region48: #{neural_env_step.1} parent=11 // pred_fallthru
          _
        // Predicated region
        $region49: #{neural_env_step.1} parent=11 // pred_check
          %p353 = pneg %p255
        $region50: #{neural_env_step.1} parent=11 // pred_check_branch
          %355 = sbr.rel (%p353) target = $region52
        $region51: #{neural_env_step.1} parent=11 // pred_region
          _
        $region52: #{neural_env_step.1} parent=11 // pred_fallthru
          _
      $region12: #{neural_env_step.1} parent=5 // pred_fallthru
        _
      %p356 = scmp.lt.s32.totalorder %s19, 2
      // Predicated region
      $region53: #{neural_env_step.1} parent=5 // pred_check
        %p357 = pneg %p356
      $region54: #{neural_env_step.1} parent=5 // pred_check_branch
        %359 = sbr.rel (%p357) target = $region56
      $region55: #{neural_env_step.1} parent=5 // pred_region
        // Predicated region
        $region57: #{neural_env_step.1} parent=55 // pred_check
          %p360 = pneg %p39
        $region58: #{neural_env_step.1} parent=55 // pred_check_branch
          %362 = sbr.rel (%p360) target = $region60
        $region59: #{neural_env_step.1} parent=55 // pred_region
          %p363 = scmp.lt.s32.totalorder %s19, 1
          %s364 = scalar_select %p363, %s19, 1
          %s365 = smul.addr %s364, 8
          %s366 = scalar_lea.vmem %s0, %s365
        $region60: #{neural_env_step.1} parent=55 // pred_fallthru
          _
      $region56: #{neural_env_step.1} parent=5 // pred_fallthru
        _
      %p367 = scmp.le.s32.totalorder 1, %s19
      %p368 = scmp.lt.s32.totalorder %s19, 3
      %p369 = pnand %p367, %p368
      %p370 = pneg %p369
      // Predicated region
      $region61: #{neural_env_step.1} parent=5 // pred_check
        _
      $region62: #{neural_env_step.1} parent=5 // pred_check_branch
        %372 = sbr.rel (%p369) target = $region64
      $region63: #{neural_env_step.1} parent=5 // pred_region
        %s373 = ssub.s32 %s19, 1
        // Predicated region
        $region65: #{neural_env_step.1} parent=63 // pred_check
          %p374 = pneg %p150
        $region66: #{neural_env_step.1} parent=63 // pred_check_branch
          %376 = sbr.rel (%p374) target = $region68
        $region67: #{neural_env_step.1} parent=63 // pred_region
          %377 = dma.done [#allocation4], 1024
        $region68: #{neural_env_step.1} parent=63 // pred_fallthru
          _
        // Predicated region
        $region69: #{neural_env_step.1} parent=63 // pred_check
          %p378 = pneg %p192
        $region70: #{neural_env_step.1} parent=63 // pred_check_branch
          %380 = sbr.rel (%p378) target = $region72
        $region71: #{neural_env_step.1} parent=63 // pred_region
          %381 = dma.done [#allocation6], 1024
        $region72: #{neural_env_step.1} parent=63 // pred_fallthru
          _
        // Predicated region
        $region73: #{neural_env_step.1} parent=63 // pred_check
          %p382 = pneg %p234
        $region74: #{neural_env_step.1} parent=63 // pred_check_branch
          %384 = sbr.rel (%p382) target = $region76
        $region75: #{neural_env_step.1} parent=63 // pred_region
          %385 = dma.done [#allocation6], 1024
        $region76: #{neural_env_step.1} parent=63 // pred_fallthru
          _
        %p386 = scmp.lt.s32.totalorder %s24, 1
        %s387 = scalar_select %p386, %s24, 1
        %s388 = smul.addr %s387, 8
        %s389 = scalar_lea.vmem %s0, %s388
        %p390 = pneg %p45
        %p391 = pneg %p42
        %p392 = pneg %p66
        %p393 = pneg %p63
        %p394 = pneg %p87
        %p395 = pneg %p84
        %p396 = pneg %p108
        %p397 = pneg %p105
        %p398 = pneg %p129
        %p399 = pneg %p126
        %p400 = pneg %p150
        %p401 = pneg %p147
        %p402 = pneg %p171
        %p403 = pneg %p168
        %p404 = pneg %p192
        %p405 = pneg %p189
        %p406 = pneg %p213
        %p407 = pneg %p210
        %p408 = pneg %p234
        %p409 = pneg %p231
        %p410 = pneg %p255
        %p411 = pneg %p252
        %p412 = pneg %p281
        %p413 = pneg %p278
        %p414 = scmp.lt.s32.totalorder %s24, 1
        %s415 = scalar_select %p414, %s24, 1
        %s416 = smul.addr %s415, 8
        %s417 = scalar_lea.vmem %s11, %s416
        %p418 = scmp.lt.s32.totalorder %s24, 1
        %s419 = scalar_select %p418, %s24, 1
        %s420 = smul.addr %s419, 8
        %s421 = scalar_lea.vmem %s0, %s420
        %p422 = scmp.lt.s32.totalorder %s24, 1
        %s423 = scalar_select %p422, %s24, 1
        %s424 = smul.addr %s423, 8
        %s425 = scalar_lea.vmem %s11, %s424
        %v427 = vld [vmem:[%s421] sm:$0xff]
        %v428 = vld [vmem:[%s1] sm:$0x1]
        %v430 = vlaneseq
        %v431 = vshrl.u32 %v430, 7
        %v432 = vsub.s32 0, %v431
        %v433 = vrot.slane %v428, %v432
        %v435 = vsub.f32 %v427, %v433
        %v436 = vld [vmem:[%s2] sm:$0x1]
        %v438 = vlaneseq
        %v439 = vshrl.u32 %v438, 7
        %v440 = vsub.s32 0, %v439
        %v441 = vrot.slane %v436, %v440
        %v443 = vmul.f32 %v435, %v441
        %444 = vst [vmem:[#allocation2] sm:$0xff] 0.0
        %vm445 = vcmask 48128
        %446 = vst.msk [vmem:[#allocation2] sm:$0xff] %vm445, %v443
        %v447 = vld [vmem:[#allocation2] sm:$0xff]
        %v448 = vpack.c.bf16 %v447, %v447
        %v449 = vld [vmem:[%s3] sm:$0xf]
        %v450 = vld [vmem:[%s3 + $0x4] sm:$0xf]
        %v451 = vld [vmem:[%s3 + $0x8] sm:$0xf]
        %v452 = vld [vmem:[%s3 + $0xc] sm:$0xf]
        %v453 = vld [vmem:[%s3 + $0x10] sm:$0xf]
        %v454 = vld [vmem:[%s3 + $0x14] sm:$0xf]
        %v455 = vld [vmem:[%s3 + $0x18] sm:$0xf]
        %v456 = vld [vmem:[%s3 + $0x1c] sm:$0xf]
        %v457 = vld [vmem:[%s3 + $0x20] sm:$0xf]
        %v458 = vld [vmem:[%s3 + $0x24] sm:$0xf]
        %v459 = vld [vmem:[%s3 + $0x28] sm:$0xf]
        %v460 = vld [vmem:[%s3 + $0x2c] sm:$0xf]
        %v461 = vld [vmem:[%s3 + $0x30] sm:$0xf]
        %v462 = vld [vmem:[%s3 + $0x34] sm:$0xf]
        %v463 = vld [vmem:[%s3 + $0x38] sm:$0xf]
        %v464 = vld [vmem:[%s3 + $0x3c] sm:$0xf]
        %v465 = vld [vmem:[%s4] sm:$0x1]
        %v467 = vlaneseq
        %v468 = vshrl.u32 %v467, 7
        %v469 = vsub.s32 0, %v468
        %v470 = vrot.slane %v465, %v469
        %v488 = vunpack.c.l.b16 %v449
        %v489 = vunpack.c.l.b16 %v450
        %v490 = vunpack.c.l.b16 %v451
        %v491 = vunpack.c.l.b16 %v452
        %v492 = vunpack.c.l.b16 %v453
        %v493 = vunpack.c.l.b16 %v454
        %v494 = vunpack.c.l.b16 %v455
        %v495 = vunpack.c.l.b16 %v456
        %v496 = vunpack.c.l.b16 %v457
        %v497 = vunpack.c.l.b16 %v458
        %v498 = vunpack.c.l.b16 %v459
        %v499 = vunpack.c.l.b16 %v460
        %v500 = vunpack.c.l.b16 %v461
        %v501 = vunpack.c.l.b16 %v462
        %v502 = vunpack.c.l.b16 %v463
        %v503 = vunpack.c.l.b16 %v464
        %v504 = vpack.c.b16 %v489, %v488
        %v505 = vpack.c.b16 %v491, %v490
        %v506 = vpack.c.b16 %v493, %v492
        %v507 = vpack.c.b16 %v495, %v494
        %v508 = vpack.c.b16 %v497, %v496
        %v509 = vpack.c.b16 %v499, %v498
        %v510 = vpack.c.b16 %v501, %v500
        %v511 = vpack.c.b16 %v503, %v502
        %520 = vmatprep.subr.bf16.mxu0 0
        %521 = vmatpush1.bf16.msra.mxu0 %v504
        %522 = vmatprep.subr.bf16.mxu0 0
        %523 = vmatpush1.bf16.msra.mxu0 %v505
        %524 = vmatprep.subr.bf16.mxu0 0
        %525 = vmatpush1.bf16.msra.mxu0 %v506
        %526 = vmatprep.subr.bf16.mxu0 0
        %527 = vmatpush1.bf16.msra.mxu0 %v507
        %528 = vmatprep.subr.bf16.mxu0 0
        %529 = vmatpush1.bf16.msra.mxu0 %v508
        %530 = vmatprep.subr.bf16.mxu0 0
        %531 = vmatpush1.bf16.msra.mxu0 %v509
        %532 = vmatprep.subr.bf16.mxu0 0
        %533 = vmatpush1.bf16.msra.mxu0 %v510
        %534 = vmatprep.subr.bf16.mxu0 0
        %535 = vmatpush1.bf16.msra.mxu0 %v511
        %536 = vmatprep.subr.bf16.mxu0 0
        %537 = vmatpush1.bf16.msra.mxu0 0
        %538 = vmatprep.subr.bf16.mxu0 0
        %539 = vmatpush1.bf16.msra.mxu0 0
        %540 = vmatprep.subr.bf16.mxu0 0
        %541 = vmatpush1.bf16.msra.mxu0 0
        %542 = vmatprep.subr.bf16.mxu0 0
        %543 = vmatpush1.bf16.msra.mxu0 0
        %544 = vmatprep.subr.bf16.mxu0 0
        %545 = vmatpush1.bf16.msra.mxu0 0
        %546 = vmatprep.subr.bf16.mxu0 0
        %547 = vmatpush1.bf16.msra.mxu0 0
        %548 = vmatprep.subr.bf16.mxu0 0
        %549 = vmatpush1.bf16.msra.mxu0 0
        %550 = vmatprep.subr.bf16.mxu0 0
        %551 = vmatpush1.bf16.msra.mxu0 0
        %552 = vmatprep.mubr.bf16.mxu0 0
        %553 = vmatmul.mubr.bf16.gmra.mrb[0].mxu0 %v448
        %v554 = vpop.f32.mrb[0].mxu0
        %v555 = vadd.f32 %v470, %v554
        %v556 = vpop.f32.mrb[0].mxu0
        %v557 = vpop.f32.mrb[0].mxu0
        %v558 = vpop.f32.mrb[0].mxu0
        %559 = vdwg.mxu0
        %v560 = vtanh.pop %v555
        %v561 = vpack.c.bf16 %v560, %v560
        %v562 = vld [vmem:[#allocation3] sm:$0xf]
        %v563 = vld [vmem:[#allocation3 + $0x4] sm:$0xf]
        %v564 = vld [vmem:[#allocation3 + $0x8] sm:$0xf]
        %v565 = vld [vmem:[#allocation3 + $0xc] sm:$0xf]
        %v566 = vld [vmem:[#allocation3 + $0x10] sm:$0xf]
        %v567 = vld [vmem:[#allocation3 + $0x14] sm:$0xf]
        %v568 = vld [vmem:[#allocation3 + $0x18] sm:$0xf]
        %v569 = vld [vmem:[#allocation3 + $0x1c] sm:$0xf]
        %v570 = vld [vmem:[#allocation3 + $0x20] sm:$0xf]
        %v571 = vld [vmem:[#allocation3 + $0x24] sm:$0xf]
        %v572 = vld [vmem:[#allocation3 + $0x28] sm:$0xf]
        %v573 = vld [vmem:[#allocation3 + $0x2c] sm:$0xf]
        %v574 = vld [vmem:[#allocation3 + $0x30] sm:$0xf]
        %v575 = vld [vmem:[#allocation3 + $0x34] sm:$0xf]
        %v576 = vld [vmem:[#allocation3 + $0x38] sm:$0xf]
        %v577 = vld [vmem:[#allocation3 + $0x3c] sm:$0xf]
        %v578 = vld [vmem:[%s6] sm:$0x1]
        %v580 = vlaneseq
        %v581 = vshrl.u32 %v580, 7
        %v582 = vsub.s32 0, %v581
        %v583 = vrot.slane %v578, %v582
        %v601 = vunpack.c.l.b16 %v562
        %v602 = vunpack.c.l.b16 %v563
        %v603 = vunpack.c.l.b16 %v564
        %v604 = vunpack.c.l.b16 %v565
        %v605 = vunpack.c.l.b16 %v566
        %v606 = vunpack.c.l.b16 %v567
        %v607 = vunpack.c.l.b16 %v568
        %v608 = vunpack.c.l.b16 %v569
        %v609 = vunpack.c.l.b16 %v570
        %v610 = vunpack.c.l.b16 %v571
        %v611 = vunpack.c.l.b16 %v572
        %v612 = vunpack.c.l.b16 %v573
        %v613 = vunpack.c.l.b16 %v574
        %v614 = vunpack.c.l.b16 %v575
        %v615 = vunpack.c.l.b16 %v576
        %v616 = vunpack.c.l.b16 %v577
        %v617 = vpack.c.b16 %v602, %v601
        %v618 = vpack.c.b16 %v604, %v603
        %v619 = vpack.c.b16 %v606, %v605
        %v620 = vpack.c.b16 %v608, %v607
        %v621 = vpack.c.b16 %v610, %v609
        %v622 = vpack.c.b16 %v612, %v611
        %v623 = vpack.c.b16 %v614, %v613
        %v624 = vpack.c.b16 %v616, %v615
        %633 = vmatprep.subr.bf16.mxu0 0
        %634 = vmatpush1.bf16.msra.mxu0 %v617
        %635 = vmatprep.subr.bf16.mxu0 0
        %636 = vmatpush1.bf16.msra.mxu0 %v618
        %637 = vmatprep.subr.bf16.mxu0 0
        %638 = vmatpush1.bf16.msra.mxu0 %v619
        %639 = vmatprep.subr.bf16.mxu0 0
        %640 = vmatpush1.bf16.msra.mxu0 %v620
        %641 = vmatprep.subr.bf16.mxu0 0
        %642 = vmatpush1.bf16.msra.mxu0 %v621
        %643 = vmatprep.subr.bf16.mxu0 0
        %644 = vmatpush1.bf16.msra.mxu0 %v622
        %645 = vmatprep.subr.bf16.mxu0 0
        %646 = vmatpush1.bf16.msra.mxu0 %v623
        %647 = vmatprep.subr.bf16.mxu0 0
        %648 = vmatpush1.bf16.msra.mxu0 %v624
        %649 = vmatprep.subr.bf16.mxu0 0
        %650 = vmatpush1.bf16.msra.mxu0 0
        %651 = vmatprep.subr.bf16.mxu0 0
        %652 = vmatpush1.bf16.msra.mxu0 0
        %653 = vmatprep.subr.bf16.mxu0 0
        %654 = vmatpush1.bf16.msra.mxu0 0
        %655 = vmatprep.subr.bf16.mxu0 0
        %656 = vmatpush1.bf16.msra.mxu0 0
        %657 = vmatprep.subr.bf16.mxu0 0
        %658 = vmatpush1.bf16.msra.mxu0 0
        %659 = vmatprep.subr.bf16.mxu0 0
        %660 = vmatpush1.bf16.msra.mxu0 0
        %661 = vmatprep.subr.bf16.mxu0 0
        %662 = vmatpush1.bf16.msra.mxu0 0
        %663 = vmatprep.subr.bf16.mxu0 0
        %664 = vmatpush1.bf16.msra.mxu0 0
        %665 = vmatprep.mubr.bf16.mxu0 0
        %666 = vmatmul.mubr.bf16.gmra.mrb[0].mxu0 %v561
        %v667 = vpop.f32.mrb[0].mxu0
        %v668 = vadd.f32 %v583, %v667
        %v669 = vpop.f32.mrb[0].mxu0
        %v670 = vpop.f32.mrb[0].mxu0
        %v671 = vpop.f32.mrb[0].mxu0
        %672 = vdwg.mxu0
        %v673 = vtanh.pop %v668
        %v674 = vpack.c.bf16 %v673, %v673
        %v675 = vld [vmem:[#allocation5] sm:$0xf]
        %v676 = vld [vmem:[#allocation5 + $0x4] sm:$0xf]
        %v677 = vld [vmem:[#allocation5 + $0x8] sm:$0xf]
        %v678 = vld [vmem:[#allocation5 + $0xc] sm:$0xf]
        %v679 = vld [vmem:[#allocation5 + $0x10] sm:$0xf]
        %v680 = vld [vmem:[#allocation5 + $0x14] sm:$0xf]
        %v681 = vld [vmem:[#allocation5 + $0x18] sm:$0xf]
        %v682 = vld [vmem:[#allocation5 + $0x1c] sm:$0xf]
        %v683 = vld [vmem:[#allocation5 + $0x20] sm:$0xf]
        %v684 = vld [vmem:[#allocation5 + $0x24] sm:$0xf]
        %v685 = vld [vmem:[#allocation5 + $0x28] sm:$0xf]
        %v686 = vld [vmem:[#allocation5 + $0x2c] sm:$0xf]
        %v687 = vld [vmem:[#allocation5 + $0x30] sm:$0xf]
        %v688 = vld [vmem:[#allocation5 + $0x34] sm:$0xf]
        %v689 = vld [vmem:[#allocation5 + $0x38] sm:$0xf]
        %v690 = vld [vmem:[#allocation5 + $0x3c] sm:$0xf]
        %v691 = vld [vmem:[%s8] sm:$0x1]
        %v693 = vlaneseq
        %v694 = vshrl.u32 %v693, 7
        %v695 = vsub.s32 0, %v694
        %v696 = vrot.slane %v691, %v695
        %v714 = vunpack.c.l.b16 %v675
        %v715 = vunpack.c.l.b16 %v676
        %v716 = vunpack.c.l.b16 %v677
        %v717 = vunpack.c.l.b16 %v678
        %v718 = vunpack.c.l.b16 %v679
        %v719 = vunpack.c.l.b16 %v680
        %v720 = vunpack.c.l.b16 %v681
        %v721 = vunpack.c.l.b16 %v682
        %v722 = vunpack.c.l.b16 %v683
        %v723 = vunpack.c.l.b16 %v684
        %v724 = vunpack.c.l.b16 %v685
        %v725 = vunpack.c.l.b16 %v686
        %v726 = vunpack.c.l.b16 %v687
        %v727 = vunpack.c.l.b16 %v688
        %v728 = vunpack.c.l.b16 %v689
        %v729 = vunpack.c.l.b16 %v690
        %v730 = vpack.c.b16 %v715, %v714
        %v731 = vpack.c.b16 %v717, %v716
        %v732 = vpack.c.b16 %v719, %v718
        %v733 = vpack.c.b16 %v721, %v720
        %v734 = vpack.c.b16 %v723, %v722
        %v735 = vpack.c.b16 %v725, %v724
        %v736 = vpack.c.b16 %v727, %v726
        %v737 = vpack.c.b16 %v729, %v728
        %746 = vmatprep.subr.bf16.mxu0 0
        %747 = vmatpush1.bf16.msra.mxu0 %v730
        %748 = vmatprep.subr.bf16.mxu0 0
        %749 = vmatpush1.bf16.msra.mxu0 %v731
        %750 = vmatprep.subr.bf16.mxu0 0
        %751 = vmatpush1.bf16.msra.mxu0 %v732
        %752 = vmatprep.subr.bf16.mxu0 0
        %753 = vmatpush1.bf16.msra.mxu0 %v733
        %754 = vmatprep.subr.bf16.mxu0 0
        %755 = vmatpush1.bf16.msra.mxu0 %v734
        %756 = vmatprep.subr.bf16.mxu0 0
        %757 = vmatpush1.bf16.msra.mxu0 %v735
        %758 = vmatprep.subr.bf16.mxu0 0
        %759 = vmatpush1.bf16.msra.mxu0 %v736
        %760 = vmatprep.subr.bf16.mxu0 0
        %761 = vmatpush1.bf16.msra.mxu0 %v737
        %762 = vmatprep.subr.bf16.mxu0 0
        %763 = vmatpush1.bf16.msra.mxu0 0
        %764 = vmatprep.subr.bf16.mxu0 0
        %765 = vmatpush1.bf16.msra.mxu0 0
        %766 = vmatprep.subr.bf16.mxu0 0
        %767 = vmatpush1.bf16.msra.mxu0 0
        %768 = vmatprep.subr.bf16.mxu0 0
        %769 = vmatpush1.bf16.msra.mxu0 0
        %770 = vmatprep.subr.bf16.mxu0 0
        %771 = vmatpush1.bf16.msra.mxu0 0
        %772 = vmatprep.subr.bf16.mxu0 0
        %773 = vmatpush1.bf16.msra.mxu0 0
        %774 = vmatprep.subr.bf16.mxu0 0
        %775 = vmatpush1.bf16.msra.mxu0 0
        %776 = vmatprep.subr.bf16.mxu0 0
        %777 = vmatpush1.bf16.msra.mxu0 0
        %778 = vmatprep.mubr.bf16.mxu0 0
        %779 = vmatmul.mubr.bf16.gmra.mrb[0].mxu0 %v674
        %v780 = vpop.f32.mrb[0].mxu0
        %v781 = vadd.f32 %v696, %v780
        %v782 = vpop.f32.mrb[0].mxu0
        %v783 = vpop.f32.mrb[0].mxu0
        %v784 = vpop.f32.mrb[0].mxu0
        %785 = vdwg.mxu0
        %v786 = vtanh.pop %v781
        %v787 = vpack.c.bf16 %v786, %v786
        %v788 = vld [vmem:[#allocation7] sm:$0xf]
        %v789 = vld [vmem:[#allocation7 + $0x4] sm:$0xf]
        %v790 = vld [vmem:[#allocation7 + $0x8] sm:$0xf]
        %v791 = vld [vmem:[#allocation7 + $0xc] sm:$0xf]
        %v792 = vld [vmem:[#allocation7 + $0x10] sm:$0xf]
        %v793 = vld [vmem:[#allocation7 + $0x14] sm:$0xf]
        %v794 = vld [vmem:[#allocation7 + $0x18] sm:$0xf]
        %v795 = vld [vmem:[#allocation7 + $0x1c] sm:$0xf]
        %v796 = vld [vmem:[#allocation7 + $0x20] sm:$0xf]
        %v797 = vld [vmem:[#allocation7 + $0x24] sm:$0xf]
        %v798 = vld [vmem:[#allocation7 + $0x28] sm:$0xf]
        %v799 = vld [vmem:[#allocation7 + $0x2c] sm:$0xf]
        %v800 = vld [vmem:[#allocation7 + $0x30] sm:$0xf]
        %v801 = vld [vmem:[#allocation7 + $0x34] sm:$0xf]
        %v802 = vld [vmem:[#allocation7 + $0x38] sm:$0xf]
        %v803 = vld [vmem:[#allocation7 + $0x3c] sm:$0xf]
        %v804 = vld [vmem:[%s10] sm:$0x1]
        %v806 = vlaneseq
        %v807 = vshrl.u32 %v806, 7
        %v808 = vsub.s32 0, %v807
        %v809 = vrot.slane %v804, %v808
        %v827 = vunpack.c.l.b16 %v788
        %v828 = vunpack.c.l.b16 %v789
        %v829 = vunpack.c.l.b16 %v790
        %v830 = vunpack.c.l.b16 %v791
        %v831 = vunpack.c.l.b16 %v792
        %v832 = vunpack.c.l.b16 %v793
        %v833 = vunpack.c.l.b16 %v794
        %v834 = vunpack.c.l.b16 %v795
        %v835 = vunpack.c.l.b16 %v796
        %v836 = vunpack.c.l.b16 %v797
        %v837 = vunpack.c.l.b16 %v798
        %v838 = vunpack.c.l.b16 %v799
        %v839 = vunpack.c.l.b16 %v800
        %v840 = vunpack.c.l.b16 %v801
        %v841 = vunpack.c.l.b16 %v802
        %v842 = vunpack.c.l.b16 %v803
        %v843 = vpack.c.b16 %v828, %v827
        %v844 = vpack.c.b16 %v830, %v829
        %v845 = vpack.c.b16 %v832, %v831
        %v846 = vpack.c.b16 %v834, %v833
        %v847 = vpack.c.b16 %v836, %v835
        %v848 = vpack.c.b16 %v838, %v837
        %v849 = vpack.c.b16 %v840, %v839
        %v850 = vpack.c.b16 %v842, %v841
        %859 = vmatprep.subr.bf16.mxu0 0
        %860 = vmatpush1.bf16.msra.mxu0 %v843
        %861 = vmatprep.subr.bf16.mxu0 0
        %862 = vmatpush1.bf16.msra.mxu0 %v844
        %863 = vmatprep.subr.bf16.mxu0 0
        %864 = vmatpush1.bf16.msra.mxu0 %v845
        %865 = vmatprep.subr.bf16.mxu0 0
        %866 = vmatpush1.bf16.msra.mxu0 %v846
        %867 = vmatprep.subr.bf16.mxu0 0
        %868 = vmatpush1.bf16.msra.mxu0 %v847
        %869 = vmatprep.subr.bf16.mxu0 0
        %870 = vmatpush1.bf16.msra.mxu0 %v848
        %871 = vmatprep.subr.bf16.mxu0 0
        %872 = vmatpush1.bf16.msra.mxu0 %v849
        %873 = vmatprep.subr.bf16.mxu0 0
        %874 = vmatpush1.bf16.msra.mxu0 %v850
        %875 = vmatprep.subr.bf16.mxu0 0
        %876 = vmatpush1.bf16.msra.mxu0 0
        %877 = vmatprep.subr.bf16.mxu0 0
        %878 = vmatpush1.bf16.msra.mxu0 0
        %879 = vmatprep.subr.bf16.mxu0 0
        %880 = vmatpush1.bf16.msra.mxu0 0
        %881 = vmatprep.subr.bf16.mxu0 0
        %882 = vmatpush1.bf16.msra.mxu0 0
        %883 = vmatprep.subr.bf16.mxu0 0
        %884 = vmatpush1.bf16.msra.mxu0 0
        %885 = vmatprep.subr.bf16.mxu0 0
        %886 = vmatpush1.bf16.msra.mxu0 0
        %887 = vmatprep.subr.bf16.mxu0 0
        %888 = vmatpush1.bf16.msra.mxu0 0
        %889 = vmatprep.subr.bf16.mxu0 0
        %890 = vmatpush1.bf16.msra.mxu0 0
        %891 = vmatprep.mubr.bf16.mxu0 0
        %892 = vmatmul.mubr.bf16.gmra.mrb[0].mxu0 %v787
        %v893 = vpop.f32.mrb[0].mxu0
        %v894 = vadd.f32 %v809, %v893
        %v895 = vpop.f32.mrb[0].mxu0
        %v896 = vpop.f32.mrb[0].mxu0
        %v897 = vpop.f32.mrb[0].mxu0
        %898 = vdwg.mxu0
        %v899 = vmul.f32 %v894, 0.01
        %v900 = vadd.f32 %v427, %v899
        %vm901 = vcmask 31744
        %902 = vst.msk [vmem:[%s425] sm:$0xff] %vm901, %v900
        %p903 = scmp.lt.s32.totalorder %s24, 1
        %s904 = scalar_select %p903, %s24, 1
        %s905 = smul.addr %s904, 8
        %s906 = scalar_lea.vmem %s11, %s905
        // Predicated region
        $region77: #{neural_env_step.1} parent=63 // pred_check
          %p907 = pneg %p278
        $region78: #{neural_env_step.1} parent=63 // pred_check_branch
          %909 = sbr.rel (%p907) target = $region80
        $region79: #{neural_env_step.1} parent=63 // pred_region
          _
        $region80: #{neural_env_step.1} parent=63 // pred_fallthru
          _
      $region64: #{neural_env_step.1} parent=5 // pred_fallthru
        _
      %p910 = scmp.le.s32.totalorder 2, %s19
      // Predicated region
      $region81: #{neural_env_step.1} parent=5 // pred_check
        %p911 = pneg %p910
      $region82: #{neural_env_step.1} parent=5 // pred_check_branch
        %913 = sbr.rel (%p911) target = $region84
      $region83: #{neural_env_step.1} parent=5 // pred_region
        %s914 = ssub.s32 %s19, 2
        // Predicated region
        $region85: #{neural_env_step.1} parent=83 // pred_check
          %p915 = pneg %p284
        $region86: #{neural_env_step.1} parent=83 // pred_check_branch
          %917 = sbr.rel (%p915) target = $region88
        $region87: #{neural_env_step.1} parent=83 // pred_region
          %p918 = scmp.lt.s32.totalorder %s25, 1
          %s919 = scalar_select %p918, %s25, 1
          %s920 = smul.addr %s919, 8
          %s921 = scalar_lea.vmem %s11, %s920
        $region88: #{neural_env_step.1} parent=83 // pred_fallthru
          _
      $region84: #{neural_env_step.1} parent=5 // pred_fallthru
        _
    $region6: #{neural_env_step.1} parent=1 // loop_footer
      %s23 = sadd.s32 1, %s19
    $region7: #{neural_env_step.1} parent=1 // loop_footer_branch
      %18 = sbr.rel target = $region3
    $region8: #{neural_env_step.1} parent=1 // loop_exit
      _
    %922 = vsyncpa [#allocation4], 1
    %s923 = scalar_lea.sflag [#allocation4], 1
    %924 = vsyncpa %s923, 1
    %925 = vsyncpa [#allocation6], 1

</llo_original>
